<compile_context>
chip_gen: v7x
topology: tpu7x:2x2x1
jax: 0.10.0
libtpu: 0.0.40
codegen_flags: <defaults>
</compile_context>

<pallas_src>
import functools

import jax
import jax.numpy as jnp
from jax import lax
from jax.experimental import pallas as pl
from jax.experimental.pallas import tpu as pltpu


def _hardswish(x):
    # x * relu6(x + 3) / 6
    return x * jnp.clip(x + 3.0, 0.0, 6.0) * (1.0 / 6.0)


def bottleneck_kernel(x_ref, w1_ref, b1_ref, wdw_ref, bdw_ref, w3_ref, b3_ref,
                      mask_ref, o_ref, *, W, shortcut):
    """Whole batch in one step.  Activations are (C, N*H*W), lane-dense."""
    x = x_ref[...]                                      # (Cin, NHW), f32
    NHW = x.shape[1]

    # --- 1x1 expand conv + folded BN + Hardswish ---------------------------
    # (Cmid, Cin) @ (Cin, NHW): the 512-long dim sits on MXU N / vreg lanes.
    h = jnp.dot(w1_ref[...], x, preferred_element_type=jnp.float32)
    h = _hardswish(h + b1_ref[...])                     # (Cmid, NHW)

    # --- depthwise 3x3, stride 1, pad 1: lane rolls + boundary masks --------
    wdw = wdw_ref[...]                                  # (Cmid, 9), hoisted
    acc = jnp.zeros_like(h)
    for dy in (-1, 0, 1):
        for dx in (-1, 0, 1):
            k = (dy + 1) * 3 + (dx + 1)                 # tap index ky*3 + kx
            off = dy * W + dx                           # flat-pixel offset
            # shifted[p] = h[p + off]  (wrap-around is killed by the mask)
            shifted = pltpu.roll(h, (-off) % NHW, axis=1) if off else h
            acc = acc + wdw[:, k:k + 1] * (shifted * mask_ref[k:k + 1, :])
    acc = _hardswish(acc + bdw_ref[...])                # (Cmid, NHW)

    # --- 1x1 project conv + folded BN ---------------------------------------
    out = jnp.dot(w3_ref[...], acc, preferred_element_type=jnp.float32)
    out = out + b3_ref[...]                             # (Cout, NHW)
    if shortcut:
        out = out + x                                   # residual (Cin == Cout)
    o_ref[...] = out.astype(o_ref.dtype)


def make_dw_masks(N, H, W, dtype=jnp.float32):
    """(9, N*H*W) float masks: 1 where the 3x3 tap lands inside the image."""
    ys = jnp.arange(H).reshape(H, 1)
    xs = jnp.arange(W).reshape(1, W)
    rows = []
    for dy in (-1, 0, 1):
        for dx in (-1, 0, 1):
            ok = ((ys + dy >= 0) & (ys + dy < H) &
                  (xs + dx >= 0) & (xs + dx < W))        # (H, W)
            rows.append(jnp.tile(ok.reshape(H * W), N))  # (N*H*W,)
    return jnp.stack(rows).astype(dtype)                 # (9, N*H*W)


def bottleneck(x_nchw, params, *, shortcut=True):
    """PyTorch-layout entry point: x is NCHW, returns NCHW."""
    N, Cin, H, W = x_nchw.shape
    w1, b1, wdw, bdw, w3, b3 = params
    Cout = w3.shape[0]
    if shortcut and Cin != Cout:
        raise ValueError("shortcut=True requires in_channels == out_channels")

    # NCHW -> channel-major flattened (Cin, N*H*W); pixel index = n*H*W+y*W+x.
    x_cm = jnp.transpose(x_nchw, (1, 0, 2, 3)).reshape(Cin, N * H * W)
    masks = make_dw_masks(N, H, W, x_cm.dtype)

    kernel = functools.partial(bottleneck_kernel, W=W, shortcut=shortcut)
    out_cm = pl.pallas_call(
        kernel,
        out_shape=jax.ShapeDtypeStruct((Cout, N * H * W), x_cm.dtype),
    )(x_cm, w1, b1, wdw, bdw, w3, b3, masks)

    return jnp.transpose(out_cm.reshape(Cout, N, H, W), (1, 0, 2, 3))


def init_params(key, cin, cout, expansion=1, eps=1e-5):
    """Deterministic synthetic params; BN folded into conv weights/biases.

    Storage layouts (channel-major, matching the kernel):
      w1:  (cmid, cin)    b1:  (cmid, 1)
      wdw: (cmid, 9)      bdw: (cmid, 1)   (tap index = ky*3 + kx)
      w3:  (cout, cmid)   b3:  (cout, 1)
    """
    cmid = cin * expansion
    ks = jax.random.split(key, 18)

    def rnd(k, shape, scale=0.1):
        return scale * jax.random.normal(k, shape, jnp.float32)

    w1, b1 = rnd(ks[0], (cmid, cin)), rnd(ks[1], (cmid,))
    g1, be1 = 1.0 + rnd(ks[2], (cmid,)), rnd(ks[3], (cmid,))
    m1, v1 = rnd(ks[4], (cmid,)), 1.0 + jnp.abs(rnd(ks[5], (cmid,)))

    wdw, bdw = rnd(ks[6], (cmid, 9)), rnd(ks[7], (cmid,))
    g2, be2 = 1.0 + rnd(ks[8], (cmid,)), rnd(ks[9], (cmid,))
    m2, v2 = rnd(ks[10], (cmid,)), 1.0 + jnp.abs(rnd(ks[11], (cmid,)))

    w3, b3 = rnd(ks[12], (cout, cmid)), rnd(ks[13], (cout,))
    g3, be3 = 1.0 + rnd(ks[14], (cout,)), rnd(ks[15], (cout,))
    m3, v3 = rnd(ks[16], (cout,)), 1.0 + jnp.abs(rnd(ks[17], (cout,)))

    def fold(w, b, g, be, m, v):
        s = g / jnp.sqrt(v + eps)          # per-output-channel (axis 0 of w)
        return w * s[:, None], (b - m) * s + be

    w1f, b1f = fold(w1, b1, g1, be1, m1, v1)
    wdwf, bdwf = fold(wdw, bdw, g2, be2, m2, v2)
    w3f, b3f = fold(w3, b3, g3, be3, m3, v3)

    return (w1f, b1f[:, None], wdwf, bdwf[:, None], w3f, b3f[:, None])


def bottleneck_reference(x_nchw, params, *, shortcut=True):
    """Pure-JAX reference in NCHW (same folded-BN math, conv via lax)."""
    w1, b1, wdw, bdw, w3, b3 = params
    Cmid = w1.shape[0]
    Cout = w3.shape[0]

    h = jnp.einsum("nchw,dc->ndhw", x_nchw, w1) + b1.reshape(1, Cmid, 1, 1)
    h = _hardswish(h)

    wdw_oihw = wdw.reshape(Cmid, 1, 3, 3)
    h = lax.conv_general_dilated(
        h, wdw_oihw, window_strides=(1, 1), padding=((1, 1), (1, 1)),
        dimension_numbers=("NCHW", "OIHW", "NCHW"),
        feature_group_count=Cmid) + bdw.reshape(1, Cmid, 1, 1)
    h = _hardswish(h)

    out = jnp.einsum("nchw,dc->ndhw", h, w3) + b3.reshape(1, Cout, 1, 1)
    if shortcut:
        out = out + x_nchw
    return out


if __name__ == "__main__":
    key = jax.random.PRNGKey(0)
    kx, kp = jax.random.split(key)

    # Module config: in_channels=4, out_channels=4, stride=(1,1), expansion=2,
    # shortcut=True.  Input (PyTorch NCHW): (2, 4, 16, 16).
    N, Cin, H, W = 2, 4, 16, 16
    Cout, expansion, shortcut = 4, 2, True

    x_nchw = jax.random.normal(kx, (N, Cin, H, W), jnp.float32)
    params = init_params(kp, Cin, Cout, expansion)

    out = bottleneck(x_nchw, params, shortcut=shortcut)
    out = jax.block_until_ready(out)

    ref = bottleneck_reference(x_nchw, params, shortcut=shortcut)
    assert out.shape == (N, Cout, H, W)
    assert jnp.allclose(out, ref, rtol=1e-4, atol=1e-4), "mismatch vs reference"

    print("KERNEL_OK")
</pallas_src>

<mosaic_0001>
module attributes {stable_mosaic.version = 11 : i64} {
  func.func @bottleneck_kernel(%arg0: memref<4x512xf32, #tpu.memory_space<vmem>>, %arg1: memref<8x4xf32, #tpu.memory_space<vmem>>, %arg2: memref<8x1xf32, #tpu.memory_space<vmem>>, %arg3: memref<8x9xf32, #tpu.memory_space<vmem>>, %arg4: memref<8x1xf32, #tpu.memory_space<vmem>>, %arg5: memref<4x8xf32, #tpu.memory_space<vmem>>, %arg6: memref<4x1xf32, #tpu.memory_space<vmem>>, %arg7: memref<9x512xf32, #tpu.memory_space<vmem>>, %arg8: memref<4x512xf32, #tpu.memory_space<vmem>>) attributes {dimension_semantics = [], scalar_prefetch = 0 : i64, scratch_operands = 0 : i64, tpu.core_type = #tpu.core_type<tc>} {
    %c0 = arith.constant 0 : index
    %c0_0 = arith.constant 0 : index
    %0 = vector.load %arg0[%c0, %c0_0] : memref<4x512xf32, #tpu.memory_space<vmem>>, vector<4x512xf32>
    %c0_1 = arith.constant 0 : index
    %c0_2 = arith.constant 0 : index
    %1 = vector.load %arg1[%c0_1, %c0_2] : memref<8x4xf32, #tpu.memory_space<vmem>>, vector<8x4xf32>
    %cst = arith.constant dense<0.000000e+00> : vector<8x512xf32>
    %2 = tpu.matmul %1, %0, %cst {dimension_numbers = #tpu.dot_dimension_numbers<[1], [0], [0], [1], [0, 0, 1, 1], [], []>} : vector<8x4xf32>, vector<4x512xf32>, vector<8x512xf32> -> vector<8x512xf32>
    %c0_3 = arith.constant 0 : index
    %c0_4 = arith.constant 0 : index
    %3 = vector.load %arg2[%c0_3, %c0_4] : memref<8x1xf32, #tpu.memory_space<vmem>>, vector<8x1xf32>
    %4 = vector.broadcast %3 : vector<8x1xf32> to vector<8x512xf32>
    %5 = arith.addf %2, %4 : vector<8x512xf32>
    %cst_5 = arith.constant 3.000000e+00 : f32
    %6 = vector.broadcast %cst_5 : f32 to vector<8x512xf32>
    %7 = arith.addf %5, %6 : vector<8x512xf32>
    %cst_6 = arith.constant 0.000000e+00 : f32
    %cst_7 = arith.constant 6.000000e+00 : f32
    %8 = vector.broadcast %cst_6 : f32 to vector<8x512xf32>
    %9 = arith.maximumf %8, %7 : vector<8x512xf32>
    %10 = vector.broadcast %cst_7 : f32 to vector<8x512xf32>
    %11 = arith.minimumf %10, %9 : vector<8x512xf32>
    %12 = arith.mulf %5, %11 : vector<8x512xf32>
    %cst_8 = arith.constant 0.166666672 : f32
    %13 = vector.broadcast %cst_8 : f32 to vector<8x512xf32>
    %14 = arith.mulf %12, %13 : vector<8x512xf32>
    %c0_9 = arith.constant 0 : index
    %c0_10 = arith.constant 0 : index
    %15 = vector.load %arg3[%c0_9, %c0_10] : memref<8x9xf32, #tpu.memory_space<vmem>>, vector<8x9xf32>
    %cst_11 = arith.constant 0.000000e+00 : f32
    %16 = vector.broadcast %cst_11 : f32 to vector<8x512xf32>
    %c17_i32 = arith.constant 17 : i32
    %17 = tpu.dynamic_rotate %14 by %c17_i32 dim 1 : vector<8x512xf32>, i32 -> vector<8x512xf32>
    %18 = vector.extract_strided_slice %15 {offsets = [0, 0], sizes = [8, 1], strides = [1, 1]} : vector<8x9xf32> to vector<8x1xf32>
    %c0_12 = arith.constant 0 : index
    %c0_13 = arith.constant 0 : index
    %19 = vector.load %arg7[%c0_12, %c0_13] : memref<9x512xf32, #tpu.memory_space<vmem>>, vector<1x512xf32>
    %20 = vector.broadcast %19 : vector<1x512xf32> to vector<8x512xf32>
    %21 = arith.mulf %17, %20 : vector<8x512xf32>
    %22 = vector.broadcast %18 : vector<8x1xf32> to vector<8x512xf32>
    %23 = arith.mulf %22, %21 : vector<8x512xf32>
    %24 = arith.addf %16, %23 : vector<8x512xf32>
    %c16_i32 = arith.constant 16 : i32
    %25 = tpu.dynamic_rotate %14 by %c16_i32 dim 1 : vector<8x512xf32>, i32 -> vector<8x512xf32>
    %26 = vector.extract_strided_slice %15 {offsets = [0, 1], sizes = [8, 1], strides = [1, 1]} : vector<8x9xf32> to vector<8x1xf32>
    %c1 = arith.constant 1 : index
    %c0_14 = arith.constant 0 : index
    %27 = vector.load %arg7[%c1, %c0_14] : memref<9x512xf32, #tpu.memory_space<vmem>>, vector<1x512xf32>
    %28 = vector.broadcast %27 : vector<1x512xf32> to vector<8x512xf32>
    %29 = arith.mulf %25, %28 : vector<8x512xf32>
    %30 = vector.broadcast %26 : vector<8x1xf32> to vector<8x512xf32>
    %31 = arith.mulf %30, %29 : vector<8x512xf32>
    %32 = arith.addf %24, %31 : vector<8x512xf32>
    %c15_i32 = arith.constant 15 : i32
    %33 = tpu.dynamic_rotate %14 by %c15_i32 dim 1 : vector<8x512xf32>, i32 -> vector<8x512xf32>
    %34 = vector.extract_strided_slice %15 {offsets = [0, 2], sizes = [8, 1], strides = [1, 1]} : vector<8x9xf32> to vector<8x1xf32>
    %c2 = arith.constant 2 : index
    %c0_15 = arith.constant 0 : index
    %35 = vector.load %arg7[%c2, %c0_15] : memref<9x512xf32, #tpu.memory_space<vmem>>, vector<1x512xf32>
    %36 = vector.broadcast %35 : vector<1x512xf32> to vector<8x512xf32>
    %37 = arith.mulf %33, %36 : vector<8x512xf32>
    %38 = vector.broadcast %34 : vector<8x1xf32> to vector<8x512xf32>
    %39 = arith.mulf %38, %37 : vector<8x512xf32>
    %40 = arith.addf %32, %39 : vector<8x512xf32>
    %c1_i32 = arith.constant 1 : i32
    %41 = tpu.dynamic_rotate %14 by %c1_i32 dim 1 : vector<8x512xf32>, i32 -> vector<8x512xf32>
    %42 = vector.extract_strided_slice %15 {offsets = [0, 3], sizes = [8, 1], strides = [1, 1]} : vector<8x9xf32> to vector<8x1xf32>
    %c3 = arith.constant 3 : index
    %c0_16 = arith.constant 0 : index
    %43 = vector.load %arg7[%c3, %c0_16] : memref<9x512xf32, #tpu.memory_space<vmem>>, vector<1x512xf32>
    %44 = vector.broadcast %43 : vector<1x512xf32> to vector<8x512xf32>
    %45 = arith.mulf %41, %44 : vector<8x512xf32>
    %46 = vector.broadcast %42 : vector<8x1xf32> to vector<8x512xf32>
    %47 = arith.mulf %46, %45 : vector<8x512xf32>
    %48 = arith.addf %40, %47 : vector<8x512xf32>
    %49 = vector.extract_strided_slice %15 {offsets = [0, 4], sizes = [8, 1], strides = [1, 1]} : vector<8x9xf32> to vector<8x1xf32>
    %c4 = arith.constant 4 : index
    %c0_17 = arith.constant 0 : index
    %50 = vector.load %arg7[%c4, %c0_17] : memref<9x512xf32, #tpu.memory_space<vmem>>, vector<1x512xf32>
    %51 = vector.broadcast %50 : vector<1x512xf32> to vector<8x512xf32>
    %52 = arith.mulf %14, %51 : vector<8x512xf32>
    %53 = vector.broadcast %49 : vector<8x1xf32> to vector<8x512xf32>
    %54 = arith.mulf %53, %52 : vector<8x512xf32>
    %55 = arith.addf %48, %54 : vector<8x512xf32>
    %c511_i32 = arith.constant 511 : i32
    %56 = tpu.dynamic_rotate %14 by %c511_i32 dim 1 : vector<8x512xf32>, i32 -> vector<8x512xf32>
    %57 = vector.extract_strided_slice %15 {offsets = [0, 5], sizes = [8, 1], strides = [1, 1]} : vector<8x9xf32> to vector<8x1xf32>
    %c5 = arith.constant 5 : index
    %c0_18 = arith.constant 0 : index
    %58 = vector.load %arg7[%c5, %c0_18] : memref<9x512xf32, #tpu.memory_space<vmem>>, vector<1x512xf32>
    %59 = vector.broadcast %58 : vector<1x512xf32> to vector<8x512xf32>
    %60 = arith.mulf %56, %59 : vector<8x512xf32>
    %61 = vector.broadcast %57 : vector<8x1xf32> to vector<8x512xf32>
    %62 = arith.mulf %61, %60 : vector<8x512xf32>
    %63 = arith.addf %55, %62 : vector<8x512xf32>
    %c497_i32 = arith.constant 497 : i32
    %64 = tpu.dynamic_rotate %14 by %c497_i32 dim 1 : vector<8x512xf32>, i32 -> vector<8x512xf32>
    %65 = vector.extract_strided_slice %15 {offsets = [0, 6], sizes = [8, 1], strides = [1, 1]} : vector<8x9xf32> to vector<8x1xf32>
    %c6 = arith.constant 6 : index
    %c0_19 = arith.constant 0 : index
    %66 = vector.load %arg7[%c6, %c0_19] : memref<9x512xf32, #tpu.memory_space<vmem>>, vector<1x512xf32>
    %67 = vector.broadcast %66 : vector<1x512xf32> to vector<8x512xf32>
    %68 = arith.mulf %64, %67 : vector<8x512xf32>
    %69 = vector.broadcast %65 : vector<8x1xf32> to vector<8x512xf32>
    %70 = arith.mulf %69, %68 : vector<8x512xf32>
    %71 = arith.addf %63, %70 : vector<8x512xf32>
    %c496_i32 = arith.constant 496 : i32
    %72 = tpu.dynamic_rotate %14 by %c496_i32 dim 1 : vector<8x512xf32>, i32 -> vector<8x512xf32>
    %73 = vector.extract_strided_slice %15 {offsets = [0, 7], sizes = [8, 1], strides = [1, 1]} : vector<8x9xf32> to vector<8x1xf32>
    %c7 = arith.constant 7 : index
    %c0_20 = arith.constant 0 : index
    %74 = vector.load %arg7[%c7, %c0_20] : memref<9x512xf32, #tpu.memory_space<vmem>>, vector<1x512xf32>
    %75 = vector.broadcast %74 : vector<1x512xf32> to vector<8x512xf32>
    %76 = arith.mulf %72, %75 : vector<8x512xf32>
    %77 = vector.broadcast %73 : vector<8x1xf32> to vector<8x512xf32>
    %78 = arith.mulf %77, %76 : vector<8x512xf32>
    %79 = arith.addf %71, %78 : vector<8x512xf32>
    %c495_i32 = arith.constant 495 : i32
    %80 = tpu.dynamic_rotate %14 by %c495_i32 dim 1 : vector<8x512xf32>, i32 -> vector<8x512xf32>
    %81 = vector.extract_strided_slice %15 {offsets = [0, 8], sizes = [8, 1], strides = [1, 1]} : vector<8x9xf32> to vector<8x1xf32>
    %c8 = arith.constant 8 : index
    %c0_21 = arith.constant 0 : index
    %82 = vector.load %arg7[%c8, %c0_21] : memref<9x512xf32, #tpu.memory_space<vmem>>, vector<1x512xf32>
    %83 = vector.broadcast %82 : vector<1x512xf32> to vector<8x512xf32>
    %84 = arith.mulf %80, %83 : vector<8x512xf32>
    %85 = vector.broadcast %81 : vector<8x1xf32> to vector<8x512xf32>
    %86 = arith.mulf %85, %84 : vector<8x512xf32>
    %87 = arith.addf %79, %86 : vector<8x512xf32>
    %c0_22 = arith.constant 0 : index
    %c0_23 = arith.constant 0 : index
    %88 = vector.load %arg4[%c0_22, %c0_23] : memref<8x1xf32, #tpu.memory_space<vmem>>, vector<8x1xf32>
    %89 = vector.broadcast %88 : vector<8x1xf32> to vector<8x512xf32>
    %90 = arith.addf %87, %89 : vector<8x512xf32>
    %cst_24 = arith.constant 3.000000e+00 : f32
    %91 = vector.broadcast %cst_24 : f32 to vector<8x512xf32>
    %92 = arith.addf %90, %91 : vector<8x512xf32>
    %cst_25 = arith.constant 0.000000e+00 : f32
    %cst_26 = arith.constant 6.000000e+00 : f32
    %93 = vector.broadcast %cst_25 : f32 to vector<8x512xf32>
    %94 = arith.maximumf %93, %92 : vector<8x512xf32>
    %95 = vector.broadcast %cst_26 : f32 to vector<8x512xf32>
    %96 = arith.minimumf %95, %94 : vector<8x512xf32>
    %97 = arith.mulf %90, %96 : vector<8x512xf32>
    %cst_27 = arith.constant 0.166666672 : f32
    %98 = vector.broadcast %cst_27 : f32 to vector<8x512xf32>
    %99 = arith.mulf %97, %98 : vector<8x512xf32>
    %c0_28 = arith.constant 0 : index
    %c0_29 = arith.constant 0 : index
    %100 = vector.load %arg5[%c0_28, %c0_29] : memref<4x8xf32, #tpu.memory_space<vmem>>, vector<4x8xf32>
    %cst_30 = arith.constant dense<0.000000e+00> : vector<4x512xf32>
    %101 = tpu.matmul %100, %99, %cst_30 {dimension_numbers = #tpu.dot_dimension_numbers<[1], [0], [0], [1], [0, 0, 1, 1], [], []>} : vector<4x8xf32>, vector<8x512xf32>, vector<4x512xf32> -> vector<4x512xf32>
    %c0_31 = arith.constant 0 : index
    %c0_32 = arith.constant 0 : index
    %102 = vector.load %arg6[%c0_31, %c0_32] : memref<4x1xf32, #tpu.memory_space<vmem>>, vector<4x1xf32>
    %103 = vector.broadcast %102 : vector<4x1xf32> to vector<4x512xf32>
    %104 = arith.addf %101, %103 : vector<4x512xf32>
    %105 = arith.addf %104, %0 : vector<4x512xf32>
    %c0_33 = arith.constant 0 : index
    %c0_34 = arith.constant 0 : index
    %106 = vector.load %arg8[%c0_33, %c0_34] : memref<4x512xf32, #tpu.memory_space<vmem>>, vector<4x512xf32>
    tpu.vector_store %arg8[%c0_33, %c0_34], %105 {strides = array<i32>} : memref<4x512xf32, #tpu.memory_space<vmem>>, vector<4x512xf32>,
    return
  }
}

</mosaic_0001>

<llo_original>
// kernel: tpu_custom_call.1
$region0: #{tpu_custom_call.1}
  #allocation0 [shape = 'u32[]', space=smem, size = 0x4, offset = 0x4, fixed_abs, tag = 'smem constant byte address 0x4 - core index']
  #allocation1 [shape = 'u32[144,128]{1,0:T(1,128)}', space=vmem, size = 0x12000, scoped, tag = 'internal scratch']
  %s0 = inlined_call_operand.vmem [shape: f32[4,512], index: 0, kind: input, shape index: {}]
  %s1 = inlined_call_operand.vmem [shape: f32[8,4], index: 1, kind: input, shape index: {}]
  %s2 = inlined_call_operand.vmem [shape: f32[8,1], index: 2, kind: input, shape index: {}]
  %s3 = inlined_call_operand.vmem [shape: f32[8,9], index: 3, kind: input, shape index: {}]
  %s4 = inlined_call_operand.vmem [shape: f32[8,1], index: 4, kind: input, shape index: {}]
  %s5 = inlined_call_operand.vmem [shape: f32[4,8], index: 5, kind: input, shape index: {}]
  %s6 = inlined_call_operand.vmem [shape: f32[4,1], index: 6, kind: input, shape index: {}]
  %s7 = inlined_call_operand.hbm [shape: f32[9,512], index: 7, kind: input, shape index: {}]
  %s8 = inlined_call_operand.hbm [shape: f32[4,512], index: 8, kind: output, shape index: {}]
  %s9 = sld [smem:[#allocation0]]
  $region46: #{tpu_custom_call.1} parent=0
    _
  %s11 = ssub.s32 1, %s9
  %s12 = scalar_select 0, %s11, %s9
  $region1: #{tpu_custom_call.1} parent=0
    #allocation2 [shape = 'u8[32768]{0}', space=vmem, size = 0x8000, scoped, tag = 'input window, operand 7, single buffered']
    #allocation3 [shape = 's32[1]{0}', space=sflag, size = 0x4, scoped, tag = 'scoped memory for tpu_custom_call.1']
    #allocation4 [shape = 's32[1]{0}', space=sflag, size = 0x4, scoped, tag = 'scoped memory for tpu_custom_call.1']
    #allocation5 [shape = 'u8[8192]{0}', space=vmem, size = 0x2000, scoped, tag = 'output window, operand 0, single buffered']
    %13 = vsyncpa [#allocation3], 0
    %14 = vsyncpa [#allocation4], 0
    // Predicated region
    $region2: #{tpu_custom_call.1} parent=1 // pred_check
      _
    $region3: #{tpu_custom_call.1} parent=1 // pred_check_branch
      %16 = sbr.rel (0) target = $region5
    $region4: #{tpu_custom_call.1} parent=1 // pred_region
      _
    $region5: #{tpu_custom_call.1} parent=1 // pred_fallthru
      _
    // Predicated region
    $region6: #{tpu_custom_call.1} parent=1 // pred_check
      _
    $region7: #{tpu_custom_call.1} parent=1 // pred_check_branch
      %18 = sbr.rel (0) target = $region9
    $region8: #{tpu_custom_call.1} parent=1 // pred_region
      _
    $region9: #{tpu_custom_call.1} parent=1 // pred_fallthru
      _
    // Predicated region
    $region10: #{tpu_custom_call.1} parent=1 // pred_check
      _
    $region11: #{tpu_custom_call.1} parent=1 // pred_check_branch
      %20 = sbr.rel (0) target = $region13
    $region12: #{tpu_custom_call.1} parent=1 // pred_region
      _
    $region13: #{tpu_custom_call.1} parent=1 // pred_fallthru
      _
    // Predicated region
    $region14: #{tpu_custom_call.1} parent=1 // pred_check
      _
    $region15: #{tpu_custom_call.1} parent=1 // pred_check_branch
      %22 = sbr.rel (0) target = $region17
    $region16: #{tpu_custom_call.1} parent=1 // pred_region
      _
    $region17: #{tpu_custom_call.1} parent=1 // pred_fallthru
      _
    // Predicated region
    $region18: #{tpu_custom_call.1} parent=1 // pred_check
      _
    $region19: #{tpu_custom_call.1} parent=1 // pred_check_branch
      %24 = sbr.rel (0) target = $region21
    $region20: #{tpu_custom_call.1} parent=1 // pred_region
      _
    $region21: #{tpu_custom_call.1} parent=1 // pred_fallthru
      _
    // Predicated region
    $region22: #{tpu_custom_call.1} parent=1 // pred_check
      _
    $region23: #{tpu_custom_call.1} parent=1 // pred_check_branch
      %26 = sbr.rel (0) target = $region25
    $region24: #{tpu_custom_call.1} parent=1 // pred_region
      _
    $region25: #{tpu_custom_call.1} parent=1 // pred_fallthru
      _
    // Predicated region
    $region26: #{tpu_custom_call.1} parent=1 // pred_check
      _
    $region27: #{tpu_custom_call.1} parent=1 // pred_check_branch
      %28 = sbr.rel (0) target = $region29
    $region28: #{tpu_custom_call.1} parent=1 // pred_region
      _
    $region29: #{tpu_custom_call.1} parent=1 // pred_fallthru
      _
    // Predicated region
    $region30: #{tpu_custom_call.1} parent=1 // pred_check
      _
    $region31: #{tpu_custom_call.1} parent=1 // pred_check_branch
      %30 = sbr.rel (0) target = $region33
    $region32: #{tpu_custom_call.1} parent=1 // pred_region
      %s32 = ssub.s32 1024, 1024
      %33 = vsyncadd [#allocation3], %s32
      %s34 = sshll.u32 [#allocation2], 4
      %s35 = int_to_ptr.vmem [resolvable:$true] %s34
      %40 = dma.hbm_to_vmem [thread:$0]  %s7, 1024, %s35, [#allocation3], 512, 512, 32
    $region33: #{tpu_custom_call.1} parent=1 // pred_fallthru
      _
    // Predicated region
    $region34: #{tpu_custom_call.1} parent=1 // pred_check
      _
    $region35: #{tpu_custom_call.1} parent=1 // pred_check_branch
      %42 = sbr.rel (0) target = $region37
    $region36: #{tpu_custom_call.1} parent=1 // pred_region
      %43 = dma.done [#allocation3], 1024
    $region37: #{tpu_custom_call.1} parent=1 // pred_fallthru
      _
    %v44 = vld [vmem:[%s0] sm:$0xff]
    %v45 = vld [vmem:[%s0 + $0x8] sm:$0xff]
    %v46 = vld [vmem:[%s1] sm:$0xff]
    %v47 = vld [vmem:[%s2] sm:$0xff]
    %49 = vset.pattern.permute.xlu0 0
    %50 = vperm.xlu0 %49, %v47
    %v51 = vpop.permute.xlu0 %50
    %v55 = vcombine.high %v44, %v44
    %v56 = vcombine.high %v45, %v45
    %vm57 = vcmask 31744
    %v59 = vsel %vm57, %v46, 0
    %vm61 = vcmask 1043456
    %v62 = vsel %vm61, %v44, 0
    %v64 = vsel %vm61, %v55, 0
    %v66 = vsel %vm61, %v45, 0
    %v68 = vsel %vm61, %v56, 0
    %70 = vmatprep.subr.mxu0 %v64
    %71 = vmatpush1.msra.mxu0 %v62
    %72 = vmatprep.subr.mxu0 0.0
    %73 = vmatpush1.msra.mxu0 0.0
    %74 = vmatprep.subr.mxu0 0.0
    %75 = vmatpush1.msra.mxu0 0.0
    %76 = vmatprep.subr.mxu0 0.0
    %77 = vmatpush1.msra.mxu0 0.0
    %78 = vmatprep.subr.mxu0 0.0
    %79 = vmatpush1.msra.mxu0 0.0
    %80 = vmatprep.subr.mxu0 0.0
    %81 = vmatpush1.msra.mxu0 0.0
    %82 = vmatprep.subr.mxu0 0.0
    %83 = vmatpush1.msra.mxu0 0.0
    %84 = vmatprep.subr.mxu0 0.0
    %85 = vmatpush1.msra.mxu0 0.0
    %86 = vmatprep.subr.mxu0 0.0
    %87 = vmatpush1.msra.mxu0 0.0
    %88 = vmatprep.subr.mxu0 0.0
    %89 = vmatpush1.msra.mxu0 0.0
    %90 = vmatprep.subr.mxu0 0.0
    %91 = vmatpush1.msra.mxu0 0.0
    %92 = vmatprep.subr.mxu0 0.0
    %93 = vmatpush1.msra.mxu0 0.0
    %94 = vmatprep.subr.mxu0 0.0
    %95 = vmatpush1.msra.mxu0 0.0
    %96 = vmatprep.subr.mxu0 0.0
    %97 = vmatpush1.msra.mxu0 0.0
    %98 = vmatprep.subr.mxu0 0.0
    %99 = vmatpush1.msra.mxu0 0.0
    %100 = vmatprep.subr.mxu0 0.0
    %101 = vmatpush1.msra.mxu0 0.0
    %102 = vmatprep.subr.mxu0 0.0
    %103 = vmatpush1.msra.mxu0 0.0
    %104 = vmatprep.subr.mxu0 0.0
    %105 = vmatpush1.msra.mxu0 0.0
    %106 = vmatprep.subr.mxu0 0.0
    %107 = vmatpush1.msra.mxu0 0.0
    %108 = vmatprep.subr.mxu0 0.0
    %109 = vmatpush1.msra.mxu0 0.0
    %110 = vmatprep.subr.mxu0 0.0
    %111 = vmatpush1.msra.mxu0 0.0
    %112 = vmatprep.subr.mxu0 0.0
    %113 = vmatpush1.msra.mxu0 0.0
    %114 = vmatprep.subr.mxu0 0.0
    %115 = vmatpush1.msra.mxu0 0.0
    %116 = vmatprep.subr.mxu0 0.0
    %117 = vmatpush1.msra.mxu0 0.0
    %118 = vmatprep.subr.mxu0 0.0
    %119 = vmatpush1.msra.mxu0 0.0
    %120 = vmatprep.subr.mxu0 0.0
    %121 = vmatpush1.msra.mxu0 0.0
    %122 = vmatprep.subr.mxu0 0.0
    %123 = vmatpush1.msra.mxu0 0.0
    %124 = vmatprep.subr.mxu0 0.0
    %125 = vmatpush1.msra.mxu0 0.0
    %126 = vmatprep.subr.mxu0 0.0
    %127 = vmatpush1.msra.mxu0 0.0
    %128 = vmatprep.subr.mxu0 0.0
    %129 = vmatpush1.msra.mxu0 0.0
    %130 = vmatprep.subr.mxu0 0.0
    %131 = vmatpush1.msra.mxu0 0.0
    %132 = vmatprep.subr.mxu0 0.0
    %133 = vmatpush1.msra.mxu0 0.0
    %134 = vmatprep.mubr.f32.mxu0 0.0
    %135 = vmatmul.mubr.f32.gmra.mrb[0].mxu0 %v59
    %v136 = vpop.f32.mrb[0].mxu0
    %v137 = vadd.f32 %v51, %v136
    %v138 = vpop.f32.mrb[0].mxu0
    %v139 = vadd.f32 %v51, %v138
    %140 = vdwg.mxu0
    %141 = vmatprep.subr.mxu0 %v68
    %142 = vmatpush1.msra.mxu0 %v66
    %143 = vmatprep.subr.mxu0 0.0
    %144 = vmatpush1.msra.mxu0 0.0
    %145 = vmatprep.subr.mxu0 0.0
    %146 = vmatpush1.msra.mxu0 0.0
    %147 = vmatprep.subr.mxu0 0.0
    %148 = vmatpush1.msra.mxu0 0.0
    %149 = vmatprep.subr.mxu0 0.0
    %150 = vmatpush1.msra.mxu0 0.0
    %151 = vmatprep.subr.mxu0 0.0
    %152 = vmatpush1.msra.mxu0 0.0
    %153 = vmatprep.subr.mxu0 0.0
    %154 = vmatpush1.msra.mxu0 0.0
    %155 = vmatprep.subr.mxu0 0.0
    %156 = vmatpush1.msra.mxu0 0.0
    %157 = vmatprep.subr.mxu0 0.0
    %158 = vmatpush1.msra.mxu0 0.0
    %159 = vmatprep.subr.mxu0 0.0
    %160 = vmatpush1.msra.mxu0 0.0
    %161 = vmatprep.subr.mxu0 0.0
    %162 = vmatpush1.msra.mxu0 0.0
    %163 = vmatprep.subr.mxu0 0.0
    %164 = vmatpush1.msra.mxu0 0.0
    %165 = vmatprep.subr.mxu0 0.0
    %166 = vmatpush1.msra.mxu0 0.0
    %167 = vmatprep.subr.mxu0 0.0
    %168 = vmatpush1.msra.mxu0 0.0
    %169 = vmatprep.subr.mxu0 0.0
    %170 = vmatpush1.msra.mxu0 0.0
    %171 = vmatprep.subr.mxu0 0.0
    %172 = vmatpush1.msra.mxu0 0.0
    %173 = vmatprep.subr.mxu0 0.0
    %174 = vmatpush1.msra.mxu0 0.0
    %175 = vmatprep.subr.mxu0 0.0
    %176 = vmatpush1.msra.mxu0 0.0
    %177 = vmatprep.subr.mxu0 0.0
    %178 = vmatpush1.msra.mxu0 0.0
    %179 = vmatprep.subr.mxu0 0.0
    %180 = vmatpush1.msra.mxu0 0.0
    %181 = vmatprep.subr.mxu0 0.0
    %182 = vmatpush1.msra.mxu0 0.0
    %183 = vmatprep.subr.mxu0 0.0
    %184 = vmatpush1.msra.mxu0 0.0
    %185 = vmatprep.subr.mxu0 0.0
    %186 = vmatpush1.msra.mxu0 0.0
    %187 = vmatprep.subr.mxu0 0.0
    %188 = vmatpush1.msra.mxu0 0.0
    %189 = vmatprep.subr.mxu0 0.0
    %190 = vmatpush1.msra.mxu0 0.0
    %191 = vmatprep.subr.mxu0 0.0
    %192 = vmatpush1.msra.mxu0 0.0
    %193 = vmatprep.subr.mxu0 0.0
    %194 = vmatpush1.msra.mxu0 0.0
    %195 = vmatprep.subr.mxu0 0.0
    %196 = vmatpush1.msra.mxu0 0.0
    %197 = vmatprep.subr.mxu0 0.0
    %198 = vmatpush1.msra.mxu0 0.0
    %199 = vmatprep.subr.mxu0 0.0
    %200 = vmatpush1.msra.mxu0 0.0
    %201 = vmatprep.subr.mxu0 0.0
    %202 = vmatpush1.msra.mxu0 0.0
    %203 = vmatprep.subr.mxu0 0.0
    %204 = vmatpush1.msra.mxu0 0.0
    %205 = vmatprep.mubr.f32.mxu0 0.0
    %206 = vmatmul.mubr.f32.gmra.mrb[0].mxu0 %v59
    %v207 = vpop.f32.mrb[0].mxu0
    %v208 = vadd.f32 %v51, %v207
    %v209 = vpop.f32.mrb[0].mxu0
    %v210 = vadd.f32 %v51, %v209
    %211 = vdwg.mxu0
    %v212 = vadd.f32 %v137, 3.0
    %v213 = vadd.f32 %v139, 3.0
    %v214 = vadd.f32 %v208, 3.0
    %v215 = vadd.f32 %v210, 3.0
    %v216 = vmax.f32 %v212, 0.0
    %v217 = vmax.f32 %v213, 0.0
    %v218 = vmax.f32 %v214, 0.0
    %v219 = vmax.f32 %v215, 0.0
    %v220 = vmin.f32 %v216, 6.0
    %v221 = vmin.f32 %v217, 6.0
    %v222 = vmin.f32 %v218, 6.0
    %v223 = vmin.f32 %v219, 6.0
    %v224 = vmul.f32 %v137, %v220
    %v225 = vmul.f32 %v139, %v221
    %v226 = vmul.f32 %v208, %v222
    %v227 = vmul.f32 %v210, %v223
    %v228 = vmul.f32 %v224, 0.16666667
    %v229 = vmul.f32 %v225, 0.16666667
    %v230 = vmul.f32 %v226, 0.16666667
    %v231 = vmul.f32 %v227, 0.16666667
    %v232 = vld [vmem:[%s3] sm:$0xff]
    %233 = vrot.lane.b32.xlu0 %v228, 17
    %v234 = vpop.permute.xlu0 %233
    %235 = vrot.lane.b32.xlu0 %v229, 17
    %v236 = vpop.permute.xlu0 %235
    %237 = vrot.lane.b32.xlu0 %v230, 17
    %v238 = vpop.permute.xlu0 %237
    %239 = vrot.lane.b32.xlu0 %v231, 17
    %v240 = vpop.permute.xlu0 %239
    %v241 = vlaneseq
    %v242 = vand.u32 %v241, 127
    %vm243 = vcmp.lt.s32.totalorder %v242, 17
    %v244 = vsel %vm243, %v238, %v240
    %v245 = vsel %vm243, %v236, %v238
    %v246 = vsel %vm243, %v234, %v236
    %v247 = vsel %vm243, %v240, %v234
    %v248 = vld [vmem:[#allocation2] ss:$8 sm:$0xf]
    %v250 = vlaneseq
    %v251 = vshrl.u32 %v250, 7
    %v252 = vsub.s32 0, %v251
    %v253 = vrot.slane %v248, %v252
    %v254 = vlaneseq
    %v255 = vshrl.u32 %v254, 7
    %v256 = vsub.s32 1, %v255
    %v257 = vrot.slane %v248, %v256
    %v258 = vlaneseq
    %v259 = vshrl.u32 %v258, 7
    %v260 = vsub.s32 2, %v259
    %v261 = vrot.slane %v248, %v260
    %v262 = vlaneseq
    %v263 = vshrl.u32 %v262, 7
    %v264 = vsub.s32 3, %v263
    %v265 = vrot.slane %v248, %v264
    %v270 = vmul.f32 %v247, %v253
    %v271 = vmul.f32 %v246, %v257
    %v272 = vmul.f32 %v245, %v261
    %v273 = vmul.f32 %v244, %v265
    %275 = vset.pattern.permute.xlu0 0
    %276 = vperm.xlu0 %275, %v232
    %v277 = vpop.permute.xlu0 %276
    %v279 = vmul.f32 %v277, %v270
    %v280 = vmul.f32 %v277, %v271
    %v281 = vmul.f32 %v277, %v272
    %v282 = vmul.f32 %v277, %v273
    %v283 = vadd.f32 %v279, 0.0
    %v284 = vadd.f32 %v280, 0.0
    %v285 = vadd.f32 %v281, 0.0
    %v286 = vadd.f32 %v282, 0.0
    %287 = vrot.lane.b32.xlu0 %v228, 16
    %v288 = vpop.permute.xlu0 %287
    %289 = vrot.lane.b32.xlu0 %v229, 16
    %v290 = vpop.permute.xlu0 %289
    %291 = vrot.lane.b32.xlu0 %v230, 16
    %v292 = vpop.permute.xlu0 %291
    %293 = vrot.lane.b32.xlu0 %v231, 16
    %v294 = vpop.permute.xlu0 %293
    %vm295 = vcmp.lt.s32.totalorder %v242, 16
    %v296 = vsel %vm295, %v292, %v294
    %v297 = vsel %vm295, %v290, %v292
    %v298 = vsel %vm295, %v288, %v290
    %v299 = vsel %vm295, %v294, %v288
    %s300 = scalar_lea.vmem [#allocation2], 1
    %v301 = vld [vmem:[%s300] ss:$8 sm:$0xf]
    %v303 = vlaneseq
    %v304 = vshrl.u32 %v303, 7
    %v305 = vsub.s32 0, %v304
    %v306 = vrot.slane %v301, %v305
    %v307 = vlaneseq
    %v308 = vshrl.u32 %v307, 7
    %v309 = vsub.s32 1, %v308
    %v310 = vrot.slane %v301, %v309
    %v311 = vlaneseq
    %v312 = vshrl.u32 %v311, 7
    %v313 = vsub.s32 2, %v312
    %v314 = vrot.slane %v301, %v313
    %v315 = vlaneseq
    %v316 = vshrl.u32 %v315, 7
    %v317 = vsub.s32 3, %v316
    %v318 = vrot.slane %v301, %v317
    %v323 = vmul.f32 %v299, %v306
    %v324 = vmul.f32 %v298, %v310
    %v325 = vmul.f32 %v297, %v314
    %v326 = vmul.f32 %v296, %v318
    %327 = vset.pattern.permute.xlu0 1
    %328 = vperm.xlu0 %327, %v232
    %v329 = vpop.permute.xlu0 %328
    %v331 = vmul.f32 %v329, %v323
    %v332 = vmul.f32 %v329, %v324
    %v333 = vmul.f32 %v329, %v325
    %v334 = vmul.f32 %v329, %v326
    %v335 = vadd.f32 %v283, %v331
    %v336 = vadd.f32 %v284, %v332
    %v337 = vadd.f32 %v285, %v333
    %v338 = vadd.f32 %v286, %v334
    %339 = vrot.lane.b32.xlu0 %v228, 15
    %v340 = vpop.permute.xlu0 %339
    %341 = vrot.lane.b32.xlu0 %v229, 15
    %v342 = vpop.permute.xlu0 %341
    %343 = vrot.lane.b32.xlu0 %v230, 15
    %v344 = vpop.permute.xlu0 %343
    %345 = vrot.lane.b32.xlu0 %v231, 15
    %v346 = vpop.permute.xlu0 %345
    %vm347 = vcmp.lt.s32.totalorder %v242, 15
    %v348 = vsel %vm347, %v344, %v346
    %v349 = vsel %vm347, %v342, %v344
    %v350 = vsel %vm347, %v340, %v342
    %v351 = vsel %vm347, %v346, %v340
    %s352 = scalar_lea.vmem [#allocation2], 2
    %v353 = vld [vmem:[%s352] ss:$8 sm:$0xf]
    %v355 = vlaneseq
    %v356 = vshrl.u32 %v355, 7
    %v357 = vsub.s32 0, %v356
    %v358 = vrot.slane %v353, %v357
    %v359 = vlaneseq
    %v360 = vshrl.u32 %v359, 7
    %v361 = vsub.s32 1, %v360
    %v362 = vrot.slane %v353, %v361
    %v363 = vlaneseq
    %v364 = vshrl.u32 %v363, 7
    %v365 = vsub.s32 2, %v364
    %v366 = vrot.slane %v353, %v365
    %v367 = vlaneseq
    %v368 = vshrl.u32 %v367, 7
    %v369 = vsub.s32 3, %v368
    %v370 = vrot.slane %v353, %v369
    %v375 = vmul.f32 %v351, %v358
    %v376 = vmul.f32 %v350, %v362
    %v377 = vmul.f32 %v349, %v366
    %v378 = vmul.f32 %v348, %v370
    %379 = vset.pattern.permute.xlu0 2
    %380 = vperm.xlu0 %379, %v232
    %v381 = vpop.permute.xlu0 %380
    %v383 = vmul.f32 %v381, %v375
    %v384 = vmul.f32 %v381, %v376
    %v385 = vmul.f32 %v381, %v377
    %v386 = vmul.f32 %v381, %v378
    %v387 = vadd.f32 %v335, %v383
    %v388 = vadd.f32 %v336, %v384
    %v389 = vadd.f32 %v337, %v385
    %v390 = vadd.f32 %v338, %v386
    %391 = vrot.lane.b32.xlu0 %v228, 1
    %v392 = vpop.permute.xlu0 %391
    %393 = vrot.lane.b32.xlu0 %v229, 1
    %v394 = vpop.permute.xlu0 %393
    %395 = vrot.lane.b32.xlu0 %v230, 1
    %v396 = vpop.permute.xlu0 %395
    %397 = vrot.lane.b32.xlu0 %v231, 1
    %v398 = vpop.permute.xlu0 %397
    %vm399 = vcmp.lt.s32.totalorder %v242, 1
    %v400 = vsel %vm399, %v396, %v398
    %v401 = vsel %vm399, %v394, %v396
    %v402 = vsel %vm399, %v392, %v394
    %v403 = vsel %vm399, %v398, %v392
    %s404 = scalar_lea.vmem [#allocation2], 3
    %v405 = vld [vmem:[%s404] ss:$8 sm:$0xf]
    %v407 = vlaneseq
    %v408 = vshrl.u32 %v407, 7
    %v409 = vsub.s32 0, %v408
    %v410 = vrot.slane %v405, %v409
    %v411 = vlaneseq
    %v412 = vshrl.u32 %v411, 7
    %v413 = vsub.s32 1, %v412
    %v414 = vrot.slane %v405, %v413
    %v415 = vlaneseq
    %v416 = vshrl.u32 %v415, 7
    %v417 = vsub.s32 2, %v416
    %v418 = vrot.slane %v405, %v417
    %v419 = vlaneseq
    %v420 = vshrl.u32 %v419, 7
    %v421 = vsub.s32 3, %v420
    %v422 = vrot.slane %v405, %v421
    %v427 = vmul.f32 %v403, %v410
    %v428 = vmul.f32 %v402, %v414
    %v429 = vmul.f32 %v401, %v418
    %v430 = vmul.f32 %v400, %v422
    %431 = vset.pattern.permute.xlu0 3
    %432 = vperm.xlu0 %431, %v232
    %v433 = vpop.permute.xlu0 %432
    %v435 = vmul.f32 %v433, %v427
    %v436 = vmul.f32 %v433, %v428
    %v437 = vmul.f32 %v433, %v429
    %v438 = vmul.f32 %v433, %v430
    %v439 = vadd.f32 %v387, %v435
    %v440 = vadd.f32 %v388, %v436
    %v441 = vadd.f32 %v389, %v437
    %v442 = vadd.f32 %v390, %v438
    %s443 = scalar_lea.vmem [#allocation2], 4
    %v444 = vld [vmem:[%s443] ss:$8 sm:$0xf]
    %v446 = vlaneseq
    %v447 = vshrl.u32 %v446, 7
    %v448 = vsub.s32 0, %v447
    %v449 = vrot.slane %v444, %v448
    %v450 = vlaneseq
    %v451 = vshrl.u32 %v450, 7
    %v452 = vsub.s32 1, %v451
    %v453 = vrot.slane %v444, %v452
    %v454 = vlaneseq
    %v455 = vshrl.u32 %v454, 7
    %v456 = vsub.s32 2, %v455
    %v457 = vrot.slane %v444, %v456
    %v458 = vlaneseq
    %v459 = vshrl.u32 %v458, 7
    %v460 = vsub.s32 3, %v459
    %v461 = vrot.slane %v444, %v460
    %v466 = vmul.f32 %v228, %v449
    %v467 = vmul.f32 %v229, %v453
    %v468 = vmul.f32 %v230, %v457
    %v469 = vmul.f32 %v231, %v461
    %470 = vset.pattern.permute.xlu0 4
    %471 = vperm.xlu0 %470, %v232
    %v472 = vpop.permute.xlu0 %471
    %v474 = vmul.f32 %v472, %v466
    %v475 = vmul.f32 %v472, %v467
    %v476 = vmul.f32 %v472, %v468
    %v477 = vmul.f32 %v472, %v469
    %v478 = vadd.f32 %v439, %v474
    %v479 = vadd.f32 %v440, %v475
    %v480 = vadd.f32 %v441, %v476
    %v481 = vadd.f32 %v442, %v477
    %482 = vrot.lane.b32.xlu0 %v228, 127
    %v483 = vpop.permute.xlu0 %482
    %484 = vrot.lane.b32.xlu0 %v229, 127
    %v485 = vpop.permute.xlu0 %484
    %486 = vrot.lane.b32.xlu0 %v230, 127
    %v487 = vpop.permute.xlu0 %486
    %488 = vrot.lane.b32.xlu0 %v231, 127
    %v489 = vpop.permute.xlu0 %488
    %vm490 = vcmp.lt.s32.totalorder %v242, 127
    %v491 = vsel %vm490, %v487, %v489
    %v492 = vsel %vm490, %v485, %v487
    %v493 = vsel %vm490, %v483, %v485
    %v494 = vsel %vm490, %v489, %v483
    %s495 = scalar_lea.vmem [#allocation2], 5
    %v496 = vld [vmem:[%s495] ss:$8 sm:$0xf]
    %v498 = vlaneseq
    %v499 = vshrl.u32 %v498, 7
    %v500 = vsub.s32 0, %v499
    %v501 = vrot.slane %v496, %v500
    %v502 = vlaneseq
    %v503 = vshrl.u32 %v502, 7
    %v504 = vsub.s32 1, %v503
    %v505 = vrot.slane %v496, %v504
    %v506 = vlaneseq
    %v507 = vshrl.u32 %v506, 7
    %v508 = vsub.s32 2, %v507
    %v509 = vrot.slane %v496, %v508
    %v510 = vlaneseq
    %v511 = vshrl.u32 %v510, 7
    %v512 = vsub.s32 3, %v511
    %v513 = vrot.slane %v496, %v512
    %v518 = vmul.f32 %v493, %v501
    %v519 = vmul.f32 %v492, %v505
    %v520 = vmul.f32 %v491, %v509
    %v521 = vmul.f32 %v494, %v513
    %522 = vset.pattern.permute.xlu0 5
    %523 = vperm.xlu0 %522, %v232
    %v524 = vpop.permute.xlu0 %523
    %v526 = vmul.f32 %v524, %v518
    %v527 = vmul.f32 %v524, %v519
    %v528 = vmul.f32 %v524, %v520
    %v529 = vmul.f32 %v524, %v521
    %v530 = vadd.f32 %v478, %v526
    %v531 = vadd.f32 %v479, %v527
    %v532 = vadd.f32 %v480, %v528
    %v533 = vadd.f32 %v481, %v529
    %534 = vrot.lane.b32.xlu0 %v228, 113
    %v535 = vpop.permute.xlu0 %534
    %536 = vrot.lane.b32.xlu0 %v229, 113
    %v537 = vpop.permute.xlu0 %536
    %538 = vrot.lane.b32.xlu0 %v230, 113
    %v539 = vpop.permute.xlu0 %538
    %540 = vrot.lane.b32.xlu0 %v231, 113
    %v541 = vpop.permute.xlu0 %540
    %vm542 = vcmp.lt.s32.totalorder %v242, 113
    %v543 = vsel %vm542, %v539, %v541
    %v544 = vsel %vm542, %v537, %v539
    %v545 = vsel %vm542, %v535, %v537
    %v546 = vsel %vm542, %v541, %v535
    %s547 = scalar_lea.vmem [#allocation2], 6
    %v548 = vld [vmem:[%s547] ss:$8 sm:$0xf]
    %v550 = vlaneseq
    %v551 = vshrl.u32 %v550, 7
    %v552 = vsub.s32 0, %v551
    %v553 = vrot.slane %v548, %v552
    %v554 = vlaneseq
    %v555 = vshrl.u32 %v554, 7
    %v556 = vsub.s32 1, %v555
    %v557 = vrot.slane %v548, %v556
    %v558 = vlaneseq
    %v559 = vshrl.u32 %v558, 7
    %v560 = vsub.s32 2, %v559
    %v561 = vrot.slane %v548, %v560
    %v562 = vlaneseq
    %v563 = vshrl.u32 %v562, 7
    %v564 = vsub.s32 3, %v563
    %v565 = vrot.slane %v548, %v564
    %v570 = vmul.f32 %v545, %v553
    %v571 = vmul.f32 %v544, %v557
    %v572 = vmul.f32 %v543, %v561
    %v573 = vmul.f32 %v546, %v565
    %574 = vset.pattern.permute.xlu0 6
    %575 = vperm.xlu0 %574, %v232
    %v576 = vpop.permute.xlu0 %575
    %v578 = vmul.f32 %v576, %v570
    %v579 = vmul.f32 %v576, %v571
    %v580 = vmul.f32 %v576, %v572
    %v581 = vmul.f32 %v576, %v573
    %v582 = vadd.f32 %v530, %v578
    %v583 = vadd.f32 %v531, %v579
    %v584 = vadd.f32 %v532, %v580
    %v585 = vadd.f32 %v533, %v581
    %586 = vrot.lane.b32.xlu0 %v228, 112
    %v587 = vpop.permute.xlu0 %586
    %588 = vrot.lane.b32.xlu0 %v229, 112
    %v589 = vpop.permute.xlu0 %588
    %590 = vrot.lane.b32.xlu0 %v230, 112
    %v591 = vpop.permute.xlu0 %590
    %592 = vrot.lane.b32.xlu0 %v231, 112
    %v593 = vpop.permute.xlu0 %592
    %vm594 = vcmp.lt.s32.totalorder %v242, 112
    %v595 = vsel %vm594, %v591, %v593
    %v596 = vsel %vm594, %v589, %v591
    %v597 = vsel %vm594, %v587, %v589
    %v598 = vsel %vm594, %v593, %v587
    %s599 = scalar_lea.vmem [#allocation2], 7
    %v600 = vld [vmem:[%s599] ss:$8 sm:$0xf]
    %v602 = vlaneseq
    %v603 = vshrl.u32 %v602, 7
    %v604 = vsub.s32 0, %v603
    %v605 = vrot.slane %v600, %v604
    %v606 = vlaneseq
    %v607 = vshrl.u32 %v606, 7
    %v608 = vsub.s32 1, %v607
    %v609 = vrot.slane %v600, %v608
    %v610 = vlaneseq
    %v611 = vshrl.u32 %v610, 7
    %v612 = vsub.s32 2, %v611
    %v613 = vrot.slane %v600, %v612
    %v614 = vlaneseq
    %v615 = vshrl.u32 %v614, 7
    %v616 = vsub.s32 3, %v615
    %v617 = vrot.slane %v600, %v616
    %v622 = vmul.f32 %v597, %v605
    %v623 = vmul.f32 %v596, %v609
    %v624 = vmul.f32 %v595, %v613
    %v625 = vmul.f32 %v598, %v617
    %626 = vset.pattern.permute.xlu0 7
    %627 = vperm.xlu0 %626, %v232
    %v628 = vpop.permute.xlu0 %627
    %v630 = vmul.f32 %v628, %v622
    %v631 = vmul.f32 %v628, %v623
    %v632 = vmul.f32 %v628, %v624
    %v633 = vmul.f32 %v628, %v625
    %v634 = vadd.f32 %v582, %v630
    %v635 = vadd.f32 %v583, %v631
    %v636 = vadd.f32 %v584, %v632
    %v637 = vadd.f32 %v585, %v633
    %638 = vrot.lane.b32.xlu0 %v228, 111
    %v639 = vpop.permute.xlu0 %638
    %640 = vrot.lane.b32.xlu0 %v229, 111
    %v641 = vpop.permute.xlu0 %640
    %642 = vrot.lane.b32.xlu0 %v230, 111
    %v643 = vpop.permute.xlu0 %642
    %644 = vrot.lane.b32.xlu0 %v231, 111
    %v645 = vpop.permute.xlu0 %644
    %vm646 = vcmp.lt.s32.totalorder %v242, 111
    %v647 = vsel %vm646, %v643, %v645
    %v648 = vsel %vm646, %v641, %v643
    %v649 = vsel %vm646, %v639, %v641
    %v650 = vsel %vm646, %v645, %v639
    %s651 = scalar_lea.vmem [#allocation2], 32
    %v652 = vld [vmem:[%s651] ss:$8 sm:$0xf]
    %v654 = vlaneseq
    %v655 = vshrl.u32 %v654, 7
    %v656 = vsub.s32 0, %v655
    %v657 = vrot.slane %v652, %v656
    %v658 = vlaneseq
    %v659 = vshrl.u32 %v658, 7
    %v660 = vsub.s32 1, %v659
    %v661 = vrot.slane %v652, %v660
    %v662 = vlaneseq
    %v663 = vshrl.u32 %v662, 7
    %v664 = vsub.s32 2, %v663
    %v665 = vrot.slane %v652, %v664
    %v666 = vlaneseq
    %v667 = vshrl.u32 %v666, 7
    %v668 = vsub.s32 3, %v667
    %v669 = vrot.slane %v652, %v668
    %v674 = vmul.f32 %v649, %v657
    %v675 = vmul.f32 %v648, %v661
    %v676 = vmul.f32 %v647, %v665
    %v677 = vmul.f32 %v650, %v669
    %678 = vset.pattern.permute.xlu0 8
    %679 = vperm.xlu0 %678, %v232
    %v680 = vpop.permute.xlu0 %679
    %v682 = vmul.f32 %v680, %v674
    %v683 = vmul.f32 %v680, %v675
    %v684 = vmul.f32 %v680, %v676
    %v685 = vmul.f32 %v680, %v677
    %v686 = vadd.f32 %v634, %v682
    %v687 = vadd.f32 %v635, %v683
    %v688 = vadd.f32 %v636, %v684
    %v689 = vadd.f32 %v637, %v685
    %v690 = vld [vmem:[%s4] sm:$0xff]
    %692 = vset.pattern.permute.xlu0 0
    %693 = vperm.xlu0 %692, %v690
    %v694 = vpop.permute.xlu0 %693
    %v696 = vadd.f32 %v686, %v694
    %v697 = vadd.f32 %v687, %v694
    %v698 = vadd.f32 %v688, %v694
    %v699 = vadd.f32 %v689, %v694
    %v700 = vadd.f32 %v696, 3.0
    %v701 = vadd.f32 %v697, 3.0
    %v702 = vadd.f32 %v698, 3.0
    %v703 = vadd.f32 %v699, 3.0
    %v704 = vmax.f32 %v700, 0.0
    %v705 = vmax.f32 %v701, 0.0
    %v706 = vmax.f32 %v702, 0.0
    %v707 = vmax.f32 %v703, 0.0
    %v708 = vmin.f32 %v704, 6.0
    %v709 = vmin.f32 %v705, 6.0
    %v710 = vmin.f32 %v706, 6.0
    %v711 = vmin.f32 %v707, 6.0
    %v712 = vmul.f32 %v696, %v708
    %v713 = vmul.f32 %v697, %v709
    %v714 = vmul.f32 %v698, %v710
    %v715 = vmul.f32 %v699, %v711
    %v716 = vmul.f32 %v712, 0.16666667
    %v717 = vmul.f32 %v713, 0.16666667
    %v718 = vmul.f32 %v714, 0.16666667
    %v719 = vmul.f32 %v715, 0.16666667
    %v720 = vld [vmem:[%s5] sm:$0xf]
    %v721 = vld [vmem:[%s6] sm:$0xf]
    %723 = vset.pattern.permute.xlu0 0
    %724 = vperm.xlu0 %723, %v721
    %v725 = vpop.permute.xlu0 %724
    %vm727 = vcmask 64512
    %v729 = vsel %vm727, %v720, 0
    %731 = vmatprep.subr.mxu0 %v717
    %732 = vmatpush1.msra.mxu0 %v716
    %733 = vmatprep.subr.mxu0 0.0
    %734 = vmatpush1.msra.mxu0 0.0
    %735 = vmatprep.subr.mxu0 0.0
    %736 = vmatpush1.msra.mxu0 0.0
    %737 = vmatprep.subr.mxu0 0.0
    %738 = vmatpush1.msra.mxu0 0.0
    %739 = vmatprep.subr.mxu0 0.0
    %740 = vmatpush1.msra.mxu0 0.0
    %741 = vmatprep.subr.mxu0 0.0
    %742 = vmatpush1.msra.mxu0 0.0
    %743 = vmatprep.subr.mxu0 0.0
    %744 = vmatpush1.msra.mxu0 0.0
    %745 = vmatprep.subr.mxu0 0.0
    %746 = vmatpush1.msra.mxu0 0.0
    %747 = vmatprep.subr.mxu0 0.0
    %748 = vmatpush1.msra.mxu0 0.0
    %749 = vmatprep.subr.mxu0 0.0
    %750 = vmatpush1.msra.mxu0 0.0
    %751 = vmatprep.subr.mxu0 0.0
    %752 = vmatpush1.msra.mxu0 0.0
    %753 = vmatprep.subr.mxu0 0.0
    %754 = vmatpush1.msra.mxu0 0.0
    %755 = vmatprep.subr.mxu0 0.0
    %756 = vmatpush1.msra.mxu0 0.0
    %757 = vmatprep.subr.mxu0 0.0
    %758 = vmatpush1.msra.mxu0 0.0
    %759 = vmatprep.subr.mxu0 0.0
    %760 = vmatpush1.msra.mxu0 0.0
    %761 = vmatprep.subr.mxu0 0.0
    %762 = vmatpush1.msra.mxu0 0.0
    %763 = vmatprep.subr.mxu0 0.0
    %764 = vmatpush1.msra.mxu0 0.0
    %765 = vmatprep.subr.mxu0 0.0
    %766 = vmatpush1.msra.mxu0 0.0
    %767 = vmatprep.subr.mxu0 0.0
    %768 = vmatpush1.msra.mxu0 0.0
    %769 = vmatprep.subr.mxu0 0.0
    %770 = vmatpush1.msra.mxu0 0.0
    %771 = vmatprep.subr.mxu0 0.0
    %772 = vmatpush1.msra.mxu0 0.0
    %773 = vmatprep.subr.mxu0 0.0
    %774 = vmatpush1.msra.mxu0 0.0
    %775 = vmatprep.subr.mxu0 0.0
    %776 = vmatpush1.msra.mxu0 0.0
    %777 = vmatprep.subr.mxu0 0.0
    %778 = vmatpush1.msra.mxu0 0.0
    %779 = vmatprep.subr.mxu0 0.0
    %780 = vmatpush1.msra.mxu0 0.0
    %781 = vmatprep.subr.mxu0 0.0
    %782 = vmatpush1.msra.mxu0 0.0
    %783 = vmatprep.subr.mxu0 0.0
    %784 = vmatpush1.msra.mxu0 0.0
    %785 = vmatprep.subr.mxu0 0.0
    %786 = vmatpush1.msra.mxu0 0.0
    %787 = vmatprep.subr.mxu0 0.0
    %788 = vmatpush1.msra.mxu0 0.0
    %789 = vmatprep.subr.mxu0 0.0
    %790 = vmatpush1.msra.mxu0 0.0
    %791 = vmatprep.subr.mxu0 0.0
    %792 = vmatpush1.msra.mxu0 0.0
    %793 = vmatprep.subr.mxu0 0.0
    %794 = vmatpush1.msra.mxu0 0.0
    %795 = vmatprep.mubr.f32.mxu0 0.0
    %796 = vmatmul.mubr.f32.gmra.mrb[0].mxu0 %v729
    %v797 = vpop.f32.mrb[0].mxu0
    %v798 = vadd.f32 %v725, %v797
    %v799 = vpop.f32.mrb[0].mxu0
    %v800 = vadd.f32 %v725, %v799
    %801 = vdwg.mxu0
    %802 = vmatprep.subr.mxu0 %v719
    %803 = vmatpush1.msra.mxu0 %v718
    %804 = vmatprep.subr.mxu0 0.0
    %805 = vmatpush1.msra.mxu0 0.0
    %806 = vmatprep.subr.mxu0 0.0
    %807 = vmatpush1.msra.mxu0 0.0
    %808 = vmatprep.subr.mxu0 0.0
    %809 = vmatpush1.msra.mxu0 0.0
    %810 = vmatprep.subr.mxu0 0.0
    %811 = vmatpush1.msra.mxu0 0.0
    %812 = vmatprep.subr.mxu0 0.0
    %813 = vmatpush1.msra.mxu0 0.0
    %814 = vmatprep.subr.mxu0 0.0
    %815 = vmatpush1.msra.mxu0 0.0
    %816 = vmatprep.subr.mxu0 0.0
    %817 = vmatpush1.msra.mxu0 0.0
    %818 = vmatprep.subr.mxu0 0.0
    %819 = vmatpush1.msra.mxu0 0.0
    %820 = vmatprep.subr.mxu0 0.0
    %821 = vmatpush1.msra.mxu0 0.0
    %822 = vmatprep.subr.mxu0 0.0
    %823 = vmatpush1.msra.mxu0 0.0
    %824 = vmatprep.subr.mxu0 0.0
    %825 = vmatpush1.msra.mxu0 0.0
    %826 = vmatprep.subr.mxu0 0.0
    %827 = vmatpush1.msra.mxu0 0.0
    %828 = vmatprep.subr.mxu0 0.0
    %829 = vmatpush1.msra.mxu0 0.0
    %830 = vmatprep.subr.mxu0 0.0
    %831 = vmatpush1.msra.mxu0 0.0
    %832 = vmatprep.subr.mxu0 0.0
    %833 = vmatpush1.msra.mxu0 0.0
    %834 = vmatprep.subr.mxu0 0.0
    %835 = vmatpush1.msra.mxu0 0.0
    %836 = vmatprep.subr.mxu0 0.0
    %837 = vmatpush1.msra.mxu0 0.0
    %838 = vmatprep.subr.mxu0 0.0
    %839 = vmatpush1.msra.mxu0 0.0
    %840 = vmatprep.subr.mxu0 0.0
    %841 = vmatpush1.msra.mxu0 0.0
    %842 = vmatprep.subr.mxu0 0.0
    %843 = vmatpush1.msra.mxu0 0.0
    %844 = vmatprep.subr.mxu0 0.0
    %845 = vmatpush1.msra.mxu0 0.0
    %846 = vmatprep.subr.mxu0 0.0
    %847 = vmatpush1.msra.mxu0 0.0
    %848 = vmatprep.subr.mxu0 0.0
    %849 = vmatpush1.msra.mxu0 0.0
    %850 = vmatprep.subr.mxu0 0.0
    %851 = vmatpush1.msra.mxu0 0.0
    %852 = vmatprep.subr.mxu0 0.0
    %853 = vmatpush1.msra.mxu0 0.0
    %854 = vmatprep.subr.mxu0 0.0
    %855 = vmatpush1.msra.mxu0 0.0
    %856 = vmatprep.subr.mxu0 0.0
    %857 = vmatpush1.msra.mxu0 0.0
    %858 = vmatprep.subr.mxu0 0.0
    %859 = vmatpush1.msra.mxu0 0.0
    %860 = vmatprep.subr.mxu0 0.0
    %861 = vmatpush1.msra.mxu0 0.0
    %862 = vmatprep.subr.mxu0 0.0
    %863 = vmatpush1.msra.mxu0 0.0
    %864 = vmatprep.subr.mxu0 0.0
    %865 = vmatpush1.msra.mxu0 0.0
    %866 = vmatprep.mubr.f32.mxu0 0.0
    %867 = vmatmul.mubr.f32.gmra.mrb[0].mxu0 %v729
    %v868 = vpop.f32.mrb[0].mxu0
    %v869 = vadd.f32 %v725, %v868
    %v870 = vpop.f32.mrb[0].mxu0
    %v871 = vadd.f32 %v725, %v870
    %872 = vdwg.mxu0
    %v875 = vadd.f32 %v798, %v44
    %v876 = vadd.f32 %v800, %v55
    %v877 = vadd.f32 %v869, %v45
    %v878 = vadd.f32 %v871, %v56
    %v883 = vcombine.low %v875, %v876
    %v884 = vcombine.low %v877, %v878
    %887 = vst [vmem:[#allocation5] sm:$0xff] %v883
    %888 = vst [vmem:[#allocation5 + $0x8] sm:$0xff] %v884
    // Predicated region
    $region38: #{tpu_custom_call.1} parent=1 // pred_check
      _
    $region39: #{tpu_custom_call.1} parent=1 // pred_check_branch
      %890 = sbr.rel (0) target = $region41
    $region40: #{tpu_custom_call.1} parent=1 // pred_region
      %s892 = ssub.s32 256, 256
      %893 = vsyncadd [#allocation4], %s892
      %s895 = sshll.u32 [#allocation5], 4
      %s896 = int_to_ptr.vmem [resolvable:$true] %s895
      %898 = dma.vmem_to_hbm [thread:$0]  %s896, 256, %s8, [#allocation4]
    $region41: #{tpu_custom_call.1} parent=1 // pred_fallthru
      _
    // Predicated region
    $region42: #{tpu_custom_call.1} parent=1 // pred_check
      _
    $region43: #{tpu_custom_call.1} parent=1 // pred_check_branch
      %900 = sbr.rel (0) target = $region45
    $region44: #{tpu_custom_call.1} parent=1 // pred_region
      %901 = dma.done [#allocation4], 256
    $region45: #{tpu_custom_call.1} parent=1 // pred_fallthru
      _
    %902 = vsyncpa [#allocation3], 1
    %903 = vsyncpa [#allocation4], 1

</llo_original>
